<compile_context>
chip_gen: v5e
topology: v5e:2x2
jax: 0.10.0
libtpu: 0.0.40
codegen_flags: <defaults>
</compile_context>

<pallas_src>
import functools
import math

import jax
import jax.numpy as jnp
from jax import lax
from jax.experimental import pallas as pl
from jax.experimental.pallas import tpu as pltpu

NEG_SLOPE = 0.01  # nn.LeakyReLU default


def _kernel(x_ref, w1_ref, b1_ref, w2_ref, wc_ref, bz_ref, out_ref, *, seq_len):
    # x_ref:  (C, B*L)  batch packed into lanes (col = b*L + l)
    # w1_ref: (3, C, C) (tap, Cout, Cin)     b1_ref: (C, 1)
    # w2_ref: (C, 3)    (Cin, tap)           wc_ref: (C, 1)
    # bz_ref: (1,) in SMEM (= b2 + bc)       out_ref: (1, B*L)
    x = x_ref[...]
    C, BL = x.shape
    L = seq_len

    # Per-sample boundary masks; they also zero the roll wrap-around columns.
    col = lax.broadcasted_iota(jnp.int32, (1, BL), 1)
    pos = col % L
    is_first = pos == 0          # l == 0    -> no l-1 tap
    is_last = pos == (L - 1)     # l == L-1  -> no l+1 tap

    def left(v):   # v[:, l-1], zero-padded at l == 0
        return jnp.where(is_first, 0.0, pltpu.roll(v, 1, axis=1))

    def right(v):  # v[:, l+1], zero-padded at l == L-1
        return jnp.where(is_last, 0.0, pltpu.roll(v, BL - 1, axis=1))

    # ---- conv1: C->C, kernel 3, padding 1 (three lane-wide MXU dots) ----
    # TODO(synk): for large C on v6e/v7x, cast dot operands to bf16 (keep the
    # f32 accumulation) for ~3x MXU throughput when compute-bound.
    y = (jnp.dot(w1_ref[0], left(x), preferred_element_type=jnp.float32)
         + jnp.dot(w1_ref[1], x, preferred_element_type=jnp.float32)
         + jnp.dot(w1_ref[2], right(x), preferred_element_type=jnp.float32)
         + b1_ref[...])                                    # (C, B*L)

    # ---- LeakyReLU ----
    y = jnp.where(y > 0, y, NEG_SLOPE * y)

    # ---- conv2 (C->1, k=3, p=1) fused with the 1x1 connect on the VPU ----
    s = (w2_ref[:, 0:1] * left(y)
         + w2_ref[:, 1:2] * y
         + w2_ref[:, 2:3] * right(y)
         + wc_ref[...] * x)                                # (C, B*L)
    out_ref[...] = jnp.sum(s, axis=0, keepdims=True) + bz_ref[0]


def head_residual_block2(x, w1, b1, w2, b2, wc, bc):
    """x: (N, C, L) float32; torch-layout weights:
       w1 (C, C, 3), b1 (C,), w2 (1, C, 3), b2 (1,), wc (1, C, 1), bc (1,)."""
    N, C, L = x.shape

    # Batch chunk: ~512 lanes per grid step, always a multiple of 128 lanes so
    # every block is (8,128)-aligned (unmasked loads/stores, aligned rolls).
    g = 128 // math.gcd(L, 128)                  # smallest B with B*L % 128 == 0
    B = max(g, (max(1, 512 // L) // g) * g)
    if N <= B:                                   # tiny problem: single chunk
        B = g * pl.cdiv(N, g)
    n_chunks = pl.cdiv(N, B)
    n_pad = n_chunks * B
    if n_pad != N:
        x = jnp.pad(x, ((0, n_pad - N), (0, 0), (0, 0)))

    # Pack batch into lanes: (N_pad, C, L) -> (C, N_pad*L), col = n*L + l.
    x_packed = jnp.transpose(x, (1, 0, 2)).reshape(C, n_pad * L)

    # Repack weights for (Cout,Cin) @ (Cin, B*L) form — tiny, one-time.
    w1_k = jnp.moveaxis(w1, 2, 0)                # (3, C, C), [k] = w1[:, :, k]
    b1_m = b1.reshape(C, 1)
    w2_m = w2[0]                                 # (C, 3)
    wc_m = wc[0]                                 # (C, 1)
    bz_m = (b2 + bc).reshape(1)                  # fused scalar bias -> SMEM

    out = pl.pallas_call(
        functools.partial(_kernel, seq_len=L),
        out_shape=jax.ShapeDtypeStruct((1, n_pad * L), jnp.float32),
        grid=(n_chunks,),
        in_specs=[
            pl.BlockSpec((C, B * L), lambda n: (0, n)),
            pl.BlockSpec((3, C, C), lambda n: (0, 0, 0)),
            pl.BlockSpec((C, 1), lambda n: (0, 0)),
            pl.BlockSpec((C, 3), lambda n: (0, 0)),
            pl.BlockSpec((C, 1), lambda n: (0, 0)),
            pl.BlockSpec(memory_space=pltpu.MemorySpace.SMEM),
        ],
        out_specs=pl.BlockSpec((1, B * L), lambda n: (0, n)),
        compiler_params=pltpu.CompilerParams(
            dimension_semantics=("parallel",),   # v7x: shard chunks over 2 TCs
        ),
    )(x_packed, w1_k, b1_m, w2_m, wc_m, bz_m)

    # (1, N_pad*L) -> (N, 1, L): cheap reshape, output is already lane-dense.
    return out.reshape(n_pad, L)[:N].reshape(N, 1, L)


def _reference(x, w1, b1, w2, b2, wc, bc):
    """Plain-JAX reference using lax.conv (NCH / OIH layouts), mirrors PyTorch."""
    dn = ('NCH', 'OIH', 'NCH')
    y = lax.conv_general_dilated(x, w1, (1,), ((1, 1),), dimension_numbers=dn)
    y = y + b1.reshape(1, -1, 1)
    y = jnp.where(y > 0, y, NEG_SLOPE * y)
    y = lax.conv_general_dilated(y, w2, (1,), ((1, 1),), dimension_numbers=dn)
    y = y + b2.reshape(1, -1, 1)
    tx = lax.conv_general_dilated(x, wc, (1,), ((0, 0),), dimension_numbers=dn)
    tx = tx + bc.reshape(1, -1, 1)
    return tx + y


if __name__ == "__main__":
    base_key = jax.random.PRNGKey(0)

    def run_case(N, NFT, L, tag):
        key = jax.random.fold_in(base_key, tag)
        kx, k1, k2, k3, k4, k5, k6 = jax.random.split(key, 7)
        x = jax.random.normal(kx, (N, NFT, L), dtype=jnp.float32)
        # Deterministic synthetic parameters (torch Conv1d layouts: (Cout, Cin, K)).
        w1 = jax.random.normal(k1, (NFT, NFT, 3), dtype=jnp.float32) * 0.2
        b1 = jax.random.normal(k2, (NFT,), dtype=jnp.float32) * 0.1
        w2 = jax.random.normal(k3, (1, NFT, 3), dtype=jnp.float32) * 0.2
        b2 = jax.random.normal(k4, (1,), dtype=jnp.float32) * 0.1
        wc = jax.random.normal(k5, (1, NFT, 1), dtype=jnp.float32) * 0.2
        bc = jax.random.normal(k6, (1,), dtype=jnp.float32) * 0.1

        out = head_residual_block2(x, w1, b1, w2, b2, wc, bc)
        out = jax.block_until_ready(out)
        ref = _reference(x, w1, b1, w2, b2, wc, bc)
        assert out.shape == (N, 1, L), out.shape
        assert jnp.allclose(out, ref, atol=1e-5, rtol=1e-5), \
            float(jnp.max(jnp.abs(out - ref)))

    run_case(2, 4, 16, tag=0)    # tiny: single 128-lane block, grid=(1,)
    run_case(80, 4, 16, tag=1)   # larger: B=32 (512 lanes), grid=(3,), padded batch
    print("KERNEL_OK")
</pallas_src>

<mosaic_0001>
module attributes {stable_mosaic.version = 11 : i64} {
  func.func @_kernel(%arg0: i32, %arg1: memref<4x128xf32, #tpu.memory_space<vmem>>, %arg2: memref<3x4x4xf32, #tpu.memory_space<vmem>>, %arg3: memref<4x1xf32, #tpu.memory_space<vmem>>, %arg4: memref<4x3xf32, #tpu.memory_space<vmem>>, %arg5: memref<4x1xf32, #tpu.memory_space<vmem>>, %arg6: memref<1xf32, #tpu.memory_space<smem>>, %arg7: memref<1x128xf32, #tpu.memory_space<vmem>>) attributes {dimension_semantics = [#tpu.dimension_semantics<parallel>], iteration_bounds = array<i64: 1>, scalar_prefetch = 0 : i64, scratch_operands = 0 : i64, tpu.core_type = #tpu.core_type<tc>, window_params = [{transform_indices = @transform_0, window_bounds = array<i64: 4, 128>}, {pipeline_mode = #tpu.pipeline_mode<synchronous>, transform_indices = @transform_1, window_bounds = array<i64: 3, 4, 4>}, {pipeline_mode = #tpu.pipeline_mode<synchronous>, transform_indices = @transform_2, window_bounds = array<i64: 4, 1>}, {pipeline_mode = #tpu.pipeline_mode<synchronous>, transform_indices = @transform_3, window_bounds = array<i64: 4, 3>}, {pipeline_mode = #tpu.pipeline_mode<synchronous>, transform_indices = @transform_4, window_bounds = array<i64: 4, 1>}, {transform_indices = @transform_5, window_bounds = array<i64: 1>}, {transform_indices = @transform_6, window_bounds = array<i64: 1, 128>}]} {
    %c0 = arith.constant 0 : index
    %c0_0 = arith.constant 0 : index
    %0 = vector.load %arg1[%c0, %c0_0] : memref<4x128xf32, #tpu.memory_space<vmem>>, vector<4x128xf32>
    %1 = tpu.iota {dimensions = array<i32: 1>} : vector<1x128xi32>
    %c16_i32 = arith.constant 16 : i32
    %c0_i32 = arith.constant 0 : i32
    %2 = arith.cmpi eq, %c16_i32, %c0_i32 : i32
    %c1_i32 = arith.constant 1 : i32
    %3 = arith.select %2, %c1_i32, %c16_i32 : i32
    %4 = vector.broadcast %3 : i32 to vector<1x128xi32>
    %5 = arith.remsi %1, %4 : vector<1x128xi32>
    %c0_i32_1 = arith.constant 0 : i32
    %6 = vector.broadcast %c0_i32_1 : i32 to vector<1x128xi32>
    %7 = arith.cmpi ne, %5, %6 : vector<1x128xi32>
    %c0_i32_2 = arith.constant 0 : i32
    %8 = vector.broadcast %c0_i32_2 : i32 to vector<1x128xi32>
    %9 = arith.cmpi slt, %5, %8 : vector<1x128xi32>
    %c0_i32_3 = arith.constant 0 : i32
    %10 = arith.cmpi slt, %3, %c0_i32_3 : i32
    %11 = vector.broadcast %10 : i1 to vector<1x128xi1>
    %12 = vector.broadcast %11 : vector<1x128xi1> to vector<1x128xi1>
    %13 = arith.xori %9, %12 : vector<1x128xi1>
    %14 = arith.andi %13, %7 : vector<1x128xi1>
    %15 = vector.broadcast %3 : i32 to vector<1x128xi32>
    %16 = arith.addi %5, %15 : vector<1x128xi32>
    %17 = arith.select %14, %16, %5 : vector<1x128xi1>, vector<1x128xi32>
    %c0_i32_4 = arith.constant 0 : i32
    %18 = vector.broadcast %c0_i32_4 : i32 to vector<1x128xi32>
    %19 = arith.cmpi eq, %17, %18 : vector<1x128xi32>
    %c15_i32 = arith.constant 15 : i32
    %20 = vector.broadcast %c15_i32 : i32 to vector<1x128xi32>
    %21 = arith.cmpi eq, %17, %20 : vector<1x128xi32>
    %c0_5 = arith.constant 0 : index
    %c0_6 = arith.constant 0 : index
    %c0_7 = arith.constant 0 : index
    %22 = vector.load %arg2[%c0_5, %c0_6, %c0_7] : memref<3x4x4xf32, #tpu.memory_space<vmem>>, vector<1x4x4xf32>
    %23 = vector.shape_cast %22 : vector<1x4x4xf32> to vector<4x4xf32>
    %c1_i32_8 = arith.constant 1 : i32
    %24 = tpu.dynamic_rotate %0 by %c1_i32_8 dim 1 : vector<4x128xf32>, i32 -> vector<4x128xf32>
    %cst = arith.constant 0.000000e+00 : f32
    %25 = vector.shape_cast %19 : vector<1x128xi1> to vector<1x128xi1>
    %26 = vector.broadcast %25 : vector<1x128xi1> to vector<4x128xi1>
    %27 = vector.broadcast %cst : f32 to vector<4x128xf32>
    %28 = arith.select %26, %27, %24 : vector<4x128xi1>, vector<4x128xf32>
    %cst_9 = arith.constant dense<0.000000e+00> : vector<4x128xf32>
    %29 = tpu.matmul %23, %28, %cst_9 {dimension_numbers = #tpu.dot_dimension_numbers<[1], [0], [0], [1], [0, 0, 1, 1], [], []>} : vector<4x4xf32>, vector<4x128xf32>, vector<4x128xf32> -> vector<4x128xf32>
    %c1 = arith.constant 1 : index
    %c0_10 = arith.constant 0 : index
    %c0_11 = arith.constant 0 : index
    %30 = vector.load %arg2[%c1, %c0_10, %c0_11] : memref<3x4x4xf32, #tpu.memory_space<vmem>>, vector<1x4x4xf32>
    %31 = vector.shape_cast %30 : vector<1x4x4xf32> to vector<4x4xf32>
    %cst_12 = arith.constant dense<0.000000e+00> : vector<4x128xf32>
    %32 = tpu.matmul %31, %0, %cst_12 {dimension_numbers = #tpu.dot_dimension_numbers<[1], [0], [0], [1], [0, 0, 1, 1], [], []>} : vector<4x4xf32>, vector<4x128xf32>, vector<4x128xf32> -> vector<4x128xf32>
    %33 = arith.addf %29, %32 : vector<4x128xf32>
    %c2 = arith.constant 2 : index
    %c0_13 = arith.constant 0 : index
    %c0_14 = arith.constant 0 : index
    %34 = vector.load %arg2[%c2, %c0_13, %c0_14] : memref<3x4x4xf32, #tpu.memory_space<vmem>>, vector<1x4x4xf32>
    %35 = vector.shape_cast %34 : vector<1x4x4xf32> to vector<4x4xf32>
    %c127_i32 = arith.constant 127 : i32
    %36 = tpu.dynamic_rotate %0 by %c127_i32 dim 1 : vector<4x128xf32>, i32 -> vector<4x128xf32>
    %cst_15 = arith.constant 0.000000e+00 : f32
    %37 = vector.shape_cast %21 : vector<1x128xi1> to vector<1x128xi1>
    %38 = vector.broadcast %37 : vector<1x128xi1> to vector<4x128xi1>
    %39 = vector.broadcast %cst_15 : f32 to vector<4x128xf32>
    %40 = arith.select %38, %39, %36 : vector<4x128xi1>, vector<4x128xf32>
    %cst_16 = arith.constant dense<0.000000e+00> : vector<4x128xf32>
    %41 = tpu.matmul %35, %40, %cst_16 {dimension_numbers = #tpu.dot_dimension_numbers<[1], [0], [0], [1], [0, 0, 1, 1], [], []>} : vector<4x4xf32>, vector<4x128xf32>, vector<4x128xf32> -> vector<4x128xf32>
    %42 = arith.addf %33, %41 : vector<4x128xf32>
    %c0_17 = arith.constant 0 : index
    %c0_18 = arith.constant 0 : index
    %43 = vector.load %arg3[%c0_17, %c0_18] : memref<4x1xf32, #tpu.memory_space<vmem>>, vector<4x1xf32>
    %44 = vector.broadcast %43 : vector<4x1xf32> to vector<4x128xf32>
    %45 = arith.addf %42, %44 : vector<4x128xf32>
    %cst_19 = arith.constant 0.000000e+00 : f32
    %46 = vector.broadcast %cst_19 : f32 to vector<4x128xf32>
    %47 = arith.cmpf ogt, %45, %46 : vector<4x128xf32>
    %cst_20 = arith.constant 0.00999999977 : f32
    %48 = vector.broadcast %cst_20 : f32 to vector<4x128xf32>
    %49 = arith.mulf %48, %45 : vector<4x128xf32>
    %50 = arith.select %47, %45, %49 : vector<4x128xi1>, vector<4x128xf32>
    %c0_21 = arith.constant 0 : index
    %c0_22 = arith.constant 0 : index
    %51 = vector.load %arg4[%c0_21, %c0_22] : memref<4x3xf32, #tpu.memory_space<vmem>>, vector<4x1xf32>
    %c1_i32_23 = arith.constant 1 : i32
    %52 = tpu.dynamic_rotate %50 by %c1_i32_23 dim 1 : vector<4x128xf32>, i32 -> vector<4x128xf32>
    %cst_24 = arith.constant 0.000000e+00 : f32
    %53 = vector.shape_cast %19 : vector<1x128xi1> to vector<1x128xi1>
    %54 = vector.broadcast %53 : vector<1x128xi1> to vector<4x128xi1>
    %55 = vector.broadcast %cst_24 : f32 to vector<4x128xf32>
    %56 = arith.select %54, %55, %52 : vector<4x128xi1>, vector<4x128xf32>
    %57 = vector.broadcast %51 : vector<4x1xf32> to vector<4x128xf32>
    %58 = arith.mulf %57, %56 : vector<4x128xf32>
    %c0_25 = arith.constant 0 : index
    %c1_26 = arith.constant 1 : index
    %59 = vector.load %arg4[%c0_25, %c1_26] : memref<4x3xf32, #tpu.memory_space<vmem>>, vector<4x1xf32>
    %60 = vector.broadcast %59 : vector<4x1xf32> to vector<4x128xf32>
    %61 = arith.mulf %60, %50 : vector<4x128xf32>
    %62 = arith.addf %58, %61 : vector<4x128xf32>
    %c0_27 = arith.constant 0 : index
    %c2_28 = arith.constant 2 : index
    %63 = vector.load %arg4[%c0_27, %c2_28] : memref<4x3xf32, #tpu.memory_space<vmem>>, vector<4x1xf32>
    %c127_i32_29 = arith.constant 127 : i32
    %64 = tpu.dynamic_rotate %50 by %c127_i32_29 dim 1 : vector<4x128xf32>, i32 -> vector<4x128xf32>
    %cst_30 = arith.constant 0.000000e+00 : f32
    %65 = vector.shape_cast %21 : vector<1x128xi1> to vector<1x128xi1>
    %66 = vector.broadcast %65 : vector<1x128xi1> to vector<4x128xi1>
    %67 = vector.broadcast %cst_30 : f32 to vector<4x128xf32>
    %68 = arith.select %66, %67, %64 : vector<4x128xi1>, vector<4x128xf32>
    %69 = vector.broadcast %63 : vector<4x1xf32> to vector<4x128xf32>
    %70 = arith.mulf %69, %68 : vector<4x128xf32>
    %71 = arith.addf %62, %70 : vector<4x128xf32>
    %c0_31 = arith.constant 0 : index
    %c0_32 = arith.constant 0 : index
    %72 = vector.load %arg5[%c0_31, %c0_32] : memref<4x1xf32, #tpu.memory_space<vmem>>, vector<4x1xf32>
    %73 = vector.broadcast %72 : vector<4x1xf32> to vector<4x128xf32>
    %74 = arith.mulf %73, %0 : vector<4x128xf32>
    %75 = arith.addf %71, %74 : vector<4x128xf32>
    %cst_33 = arith.constant dense<0.000000e+00> : vector<128xf32>
    %76 = vector.multi_reduction <add>, %75, %cst_33 [0] : vector<4x128xf32> to vector<128xf32>
    %77 = vector.shape_cast %76 : vector<128xf32> to vector<1x128xf32>
    %c0_34 = arith.constant 0 : index
    %78 = memref.load %arg6[%c0_34] : memref<1xf32, #tpu.memory_space<smem>>
    %79 = vector.broadcast %78 : f32 to vector<1x128xf32>
    %80 = arith.addf %77, %79 : vector<1x128xf32>
    %c0_35 = arith.constant 0 : index
    %c0_36 = arith.constant 0 : index
    %81 = vector.load %arg7[%c0_35, %c0_36] : memref<1x128xf32, #tpu.memory_space<vmem>>, vector<1x128xf32>
    tpu.vector_store %arg7[%c0_35, %c0_36], %80 {strides = array<i32>} : memref<1x128xf32, #tpu.memory_space<vmem>>, vector<1x128xf32>,
    return
  }
  func.func @transform_0(%arg0: i32) -> (i32, i32) {
    %c0_i32 = arith.constant 0 : i32
    %c0_i32_0 = arith.constant 0 : i32
    return %c0_i32, %arg0 : i32, i32
  }
  func.func @transform_1(%arg0: i32) -> (i32, i32, i32) {
    %c0_i32 = arith.constant 0 : i32
    %c0_i32_0 = arith.constant 0 : i32
    %c0_i32_1 = arith.constant 0 : i32
    %c0_i32_2 = arith.constant 0 : i32
    return %c0_i32, %c0_i32_0, %c0_i32_1 : i32, i32, i32
  }
  func.func @transform_2(%arg0: i32) -> (i32, i32) {
    %c0_i32 = arith.constant 0 : i32
    %c0_i32_0 = arith.constant 0 : i32
    %c0_i32_1 = arith.constant 0 : i32
    return %c0_i32, %c0_i32_0 : i32, i32
  }
  func.func @transform_3(%arg0: i32) -> (i32, i32) {
    %c0_i32 = arith.constant 0 : i32
    %c0_i32_0 = arith.constant 0 : i32
    %c0_i32_1 = arith.constant 0 : i32
    return %c0_i32, %c0_i32_0 : i32, i32
  }
  func.func @transform_4(%arg0: i32) -> (i32, i32) {
    %c0_i32 = arith.constant 0 : i32
    %c0_i32_0 = arith.constant 0 : i32
    %c0_i32_1 = arith.constant 0 : i32
    return %c0_i32, %c0_i32_0 : i32, i32
  }
  func.func @transform_5(%arg0: i32) -> i32 {
    %c0_i32 = arith.constant 0 : i32
    %c0_i32_0 = arith.constant 0 : i32
    return %c0_i32 : i32
  }
  func.func @transform_6(%arg0: i32) -> (i32, i32) {
    %c0_i32 = arith.constant 0 : i32
    %c0_i32_0 = arith.constant 0 : i32
    return %c0_i32, %arg0 : i32, i32
  }
}

</mosaic_0001>

<llo_original>
// kernel: tpu_custom_call.1
$region0: #{tpu_custom_call.1}
  #allocation0 [shape = 'u32[]', space=smem, size = 0x4, offset = 0x4, fixed_abs, tag = 'smem constant byte address 0x4 - core index']
  #allocation1 [shape = 'u32[72,128]{1,0:T(1,128)}', space=vmem, size = 0x9000, scoped, tag = 'internal scratch']
  #allocation2 [shape = 'f32[1]{0:T(128)S(6)}', space=smem, size = 0x200, scoped, tag = 'scoped memory for tpu_custom_call.1']
  %s0 = inlined_call_operand.vmem [shape: f32[4,128], index: 0, kind: input, shape index: {}]
  %s1 = inlined_call_operand.hbm [shape: f32[3,4,4], index: 1, kind: input, shape index: {}]
  %s2 = inlined_call_operand.vmem [shape: f32[4,1], index: 2, kind: input, shape index: {}]
  %s3 = inlined_call_operand.vmem [shape: f32[4,3], index: 3, kind: input, shape index: {}]
  %s4 = inlined_call_operand.vmem [shape: f32[4,1], index: 4, kind: input, shape index: {}]
  %s5 = inlined_call_operand.<no memory space> [shape: f32[1], index: 5, kind: input, shape index: {}]
  %s6 = inlined_call_operand.hbm [shape: f32[1,128], index: 6, kind: output, shape index: {}]
  %s7 = sld [smem:[#allocation0]]
  $region38: #{tpu_custom_call.1} parent=0
    _
  %s9 = ssub.s32 1, %s7
  %s10 = scalar_select 0, %s9, %s7
  %11 = sst [smem:[#allocation2]] %s5
  $region1: #{tpu_custom_call.1} parent=0
    #allocation3 [shape = 'u8[6144]{0}', space=vmem, size = 0x1800, scoped, tag = 'input window, operand 1, single buffered']
    #allocation4 [shape = 's32[1]{0}', space=sflag, size = 0x4, scoped, tag = 'scoped memory for tpu_custom_call.1']
    #allocation5 [shape = 's32[1]{0}', space=sflag, size = 0x4, scoped, tag = 'scoped memory for tpu_custom_call.1']
    #allocation6 [shape = 'u8[512]{0}', space=vmem, size = 0x400, scoped, tag = 'output window, operand 0, single buffered']
    %12 = vsyncpa [#allocation4], 0
    %13 = vsyncpa [#allocation5], 0
    // Predicated region
    $region2: #{tpu_custom_call.1} parent=1 // pred_check
      _
    $region3: #{tpu_custom_call.1} parent=1 // pred_check_branch
      %15 = sbr.rel (0) target = $region5
    $region4: #{tpu_custom_call.1} parent=1 // pred_region
      _
    $region5: #{tpu_custom_call.1} parent=1 // pred_fallthru
      _
    // Predicated region
    $region6: #{tpu_custom_call.1} parent=1 // pred_check
      _
    $region7: #{tpu_custom_call.1} parent=1 // pred_check_branch
      %17 = sbr.rel (0) target = $region9
    $region8: #{tpu_custom_call.1} parent=1 // pred_region
      %19 = vsyncadd [#allocation4], 0
      %s20 = sshll.u32 %s1, 4
      %s21 = int_to_ptr.hbm [resolvable:$true] %s20
      %s22 = sshll.u32 [#allocation3], 4
      %s23 = int_to_ptr.vmem [resolvable:$true] %s22
      %28 = dma.hbm_to_vmem [thread:$0]  %s21, 192, %s23, [#allocation4], 64, 64, 4
    $region9: #{tpu_custom_call.1} parent=1 // pred_fallthru
      _
    // Predicated region
    $region10: #{tpu_custom_call.1} parent=1 // pred_check
      _
    $region11: #{tpu_custom_call.1} parent=1 // pred_check_branch
      %30 = sbr.rel (0) target = $region13
    $region12: #{tpu_custom_call.1} parent=1 // pred_region
      _
    $region13: #{tpu_custom_call.1} parent=1 // pred_fallthru
      _
    // Predicated region
    $region14: #{tpu_custom_call.1} parent=1 // pred_check
      _
    $region15: #{tpu_custom_call.1} parent=1 // pred_check_branch
      %32 = sbr.rel (0) target = $region17
    $region16: #{tpu_custom_call.1} parent=1 // pred_region
      _
    $region17: #{tpu_custom_call.1} parent=1 // pred_fallthru
      _
    // Predicated region
    $region18: #{tpu_custom_call.1} parent=1 // pred_check
      _
    $region19: #{tpu_custom_call.1} parent=1 // pred_check_branch
      %34 = sbr.rel (0) target = $region21
    $region20: #{tpu_custom_call.1} parent=1 // pred_region
      _
    $region21: #{tpu_custom_call.1} parent=1 // pred_fallthru
      _
    // Predicated region
    $region22: #{tpu_custom_call.1} parent=1 // pred_check
      _
    $region23: #{tpu_custom_call.1} parent=1 // pred_check_branch
      %36 = sbr.rel (0) target = $region25
    $region24: #{tpu_custom_call.1} parent=1 // pred_region
      _
    $region25: #{tpu_custom_call.1} parent=1 // pred_fallthru
      _
    // Predicated region
    $region26: #{tpu_custom_call.1} parent=1 // pred_check
      _
    $region27: #{tpu_custom_call.1} parent=1 // pred_check_branch
      %38 = sbr.rel (0) target = $region29
    $region28: #{tpu_custom_call.1} parent=1 // pred_region
      %40 = dma.done [#allocation4], 192
    $region29: #{tpu_custom_call.1} parent=1 // pred_fallthru
      _
    %v41 = vld [vmem:[%s0] sm:$0xf]
    %v42 = vlaneseq
    %v43 = vand.u32 %v42, 127
    %vm44 = vcmp.lt.s32.totalorder %v43, 0
    %v45 = vsub.s32 0, %v43
    %v46 = vsel %vm44, %v45, %v43
    %v47 = vshrl.u32 %v46, 4
    %v48 = vand.u32 %v46, 15
    %v49 = vsub.s32 0, %v48
    %v50 = vsel %vm44, %v49, %v48
    %vm51 = vcmp.ne.s32.totalorder %v50, 0
    %vm52 = vcmp.lt.s32.totalorder %v50, 0
    %vm53 = vmand %vm52, %vm51
    %v54 = vadd.s32 %v50, 16
    %v55 = vsel %vm53, %v54, %v50
    %vm56 = vcmp.eq.s32.totalorder %v55, 0
    %vm57 = vcmp.eq.s32.totalorder %v55, 15
    %v58 = vld [vmem:[#allocation3] sm:$0xf]
    %59 = vrot.lane.b32.xlu0 %v41, 1
    %v60 = vpop.permute.xlu0 %59
    %v61 = vsel %vm56, 1, 0
    %vm62 = vcmp.eq.s32.totalorder %v61, 1
    %v63 = vsel %vm62, 0.0, %v60
    %s64 = scalar_lea.vmem [#allocation3], 4
    %v65 = vld [vmem:[%s64] sm:$0xf]
    %vm66 = vcmask 31744
    %v68 = vsel %vm66, %v65, 0
    %vm70 = vcmask 1043456
    %v72 = vsel %vm70, %v41, 0
    %74 = vmatpush.msra.mxu0 0.0
    %75 = vmatpush.msra.mxu0 0.0
    %76 = vmatpush.msra.mxu0 0.0
    %77 = vmatpush.msra.mxu0 0.0
    %78 = vmatpush.msra.mxu0 0.0
    %79 = vmatpush.msra.mxu0 0.0
    %80 = vmatpush.msra.mxu0 0.0
    %81 = vmatpush.msra.mxu0 0.0
    %82 = vmatpush.msra.mxu0 0.0
    %83 = vmatpush.msra.mxu0 0.0
    %84 = vmatpush.msra.mxu0 0.0
    %85 = vmatpush.msra.mxu0 0.0
    %86 = vmatpush.msra.mxu0 0.0
    %87 = vmatpush.msra.mxu0 0.0
    %88 = vmatpush.msra.mxu0 0.0
    %89 = vmatpush.msra.mxu0 %v72
    %90 = vmatmul.f32.gmra.mxu0 %v68
    %v91 = vpop.f32.mrf.mxu0
    %v92 = vadd.f32 0.0, %v91
    %93 = vdwg.mxu0
    %v95 = vsel %vm66, %v58, 0
    %v98 = vsel %vm70, %v63, 0
    %100 = vmatpush.msra.mxu0 0.0
    %101 = vmatpush.msra.mxu0 0.0
    %102 = vmatpush.msra.mxu0 0.0
    %103 = vmatpush.msra.mxu0 0.0
    %104 = vmatpush.msra.mxu0 0.0
    %105 = vmatpush.msra.mxu0 0.0
    %106 = vmatpush.msra.mxu0 0.0
    %107 = vmatpush.msra.mxu0 0.0
    %108 = vmatpush.msra.mxu0 0.0
    %109 = vmatpush.msra.mxu0 0.0
    %110 = vmatpush.msra.mxu0 0.0
    %111 = vmatpush.msra.mxu0 0.0
    %112 = vmatpush.msra.mxu0 0.0
    %113 = vmatpush.msra.mxu0 0.0
    %114 = vmatpush.msra.mxu0 0.0
    %115 = vmatpush.msra.mxu0 %v98
    %116 = vmatmul.f32.gmra.mxu0 %v95
    %v117 = vpop.f32.mrf.mxu0
    %v118 = vadd.f32 %v92, %v117
    %119 = vdwg.mxu0
    %s120 = scalar_lea.vmem [#allocation3], 8
    %v121 = vld [vmem:[%s120] sm:$0xf]
    %122 = vrot.lane.b32.xlu0 %v41, 127
    %v123 = vpop.permute.xlu0 %122
    %v124 = vsel %vm57, 1, 0
    %vm125 = vcmp.eq.s32.totalorder %v124, 1
    %v126 = vsel %vm125, 0.0, %v123
    %v128 = vsel %vm66, %v121, 0
    %v131 = vsel %vm70, %v126, 0
    %133 = vmatpush.msra.mxu0 0.0
    %134 = vmatpush.msra.mxu0 0.0
    %135 = vmatpush.msra.mxu0 0.0
    %136 = vmatpush.msra.mxu0 0.0
    %137 = vmatpush.msra.mxu0 0.0
    %138 = vmatpush.msra.mxu0 0.0
    %139 = vmatpush.msra.mxu0 0.0
    %140 = vmatpush.msra.mxu0 0.0
    %141 = vmatpush.msra.mxu0 0.0
    %142 = vmatpush.msra.mxu0 0.0
    %143 = vmatpush.msra.mxu0 0.0
    %144 = vmatpush.msra.mxu0 0.0
    %145 = vmatpush.msra.mxu0 0.0
    %146 = vmatpush.msra.mxu0 0.0
    %147 = vmatpush.msra.mxu0 0.0
    %148 = vmatpush.msra.mxu0 %v131
    %149 = vmatmul.f32.gmra.mxu0 %v128
    %v150 = vpop.f32.mrf.mxu0
    %v151 = vadd.f32 0.0, %v150
    %152 = vdwg.mxu0
    %v153 = vadd.f32 %v118, %v151
    %v154 = vld [vmem:[%s2] sm:$0xf]
    %156 = vset.pattern.permute.xlu0 0
    %157 = vperm.xlu0 %156, %v154
    %v158 = vpop.permute.xlu0 %157
    %v160 = vadd.f32 %v153, %v158
    %vm161 = vcmp.gt.f32.partialorder %v160, 0.0
    %v162 = vmul.f32 %v160, 0.01
    %v163 = vsel %vm161, %v160, %v162
    %v164 = vld [vmem:[%s3] sm:$0xf]
    %165 = vrot.lane.b32.xlu0 %v163, 1
    %v166 = vpop.permute.xlu0 %165
    %v167 = vsel %vm62, 0.0, %v166
    %169 = vset.pattern.permute.xlu0 0
    %170 = vperm.xlu0 %169, %v164
    %v171 = vpop.permute.xlu0 %170
    %v173 = vmul.f32 %v171, %v167
    %174 = vset.pattern.permute.xlu0 1
    %175 = vperm.xlu0 %174, %v164
    %v176 = vpop.permute.xlu0 %175
    %v178 = vmul.f32 %v176, %v163
    %v179 = vadd.f32 %v173, %v178
    %180 = vrot.lane.b32.xlu0 %v163, 127
    %v181 = vpop.permute.xlu0 %180
    %v182 = vsel %vm125, 0.0, %v181
    %183 = vset.pattern.permute.xlu0 2
    %184 = vperm.xlu0 %183, %v164
    %v185 = vpop.permute.xlu0 %184
    %v187 = vmul.f32 %v185, %v182
    %v188 = vadd.f32 %v179, %v187
    %v189 = vld [vmem:[%s4] sm:$0xf]
    %191 = vset.pattern.permute.xlu0 0
    %192 = vperm.xlu0 %191, %v189
    %v193 = vpop.permute.xlu0 %192
    %v195 = vmul.f32 %v193, %v41
    %v196 = vadd.f32 %v188, %v195
    %v197 = vsel %vm70, %v196, 0.0
    %v198 = vrot.slane %v197, 4
    %v199 = vadd.f32 %v197, %v198
    %v200 = vrot.slane %v199, 2
    %v201 = vadd.f32 %v199, %v200
    %v202 = vrot.slane %v201, 1
    %v203 = vadd.f32 %v201, %v202
    %s204 = sld [smem:[#allocation2]]
    %v205 = vstv %s204
    %v206 = vadd.f32 %v203, %v205
    %207 = vst [vmem:[#allocation6] sm:$0x1] %v206
    // Predicated region
    $region30: #{tpu_custom_call.1} parent=1 // pred_check
      _
    $region31: #{tpu_custom_call.1} parent=1 // pred_check_branch
      %209 = sbr.rel (0) target = $region33
    $region32: #{tpu_custom_call.1} parent=1 // pred_region
      %211 = vsyncadd [#allocation5], 0
      %s213 = sshll.u32 [#allocation6], 4
      %s214 = int_to_ptr.vmem [resolvable:$true] %s213
      %s215 = sshll.u32 %s6, 4
      %s216 = int_to_ptr.hbm [resolvable:$true] %s215
      %218 = dma.vmem_to_hbm [thread:$0]  %s214, 16, %s216, [#allocation5]
    $region33: #{tpu_custom_call.1} parent=1 // pred_fallthru
      _
    // Predicated region
    $region34: #{tpu_custom_call.1} parent=1 // pred_check
      _
    $region35: #{tpu_custom_call.1} parent=1 // pred_check_branch
      %220 = sbr.rel (0) target = $region37
    $region36: #{tpu_custom_call.1} parent=1 // pred_region
      %222 = dma.done [#allocation5], 16
    $region37: #{tpu_custom_call.1} parent=1 // pred_fallthru
      _
    %223 = vsyncpa [#allocation4], 1
    %224 = vsyncpa [#allocation5], 1

</llo_original>
